<compile_context>
chip_gen: v6e
topology: v6e:2x2x1
jax: 0.10.0
libtpu: 0.0.40
codegen_flags: <defaults>
</compile_context>

<pallas_src>
import jax
import jax.numpy as jnp
from jax import lax
from jax.experimental import pallas as pl
from jax.experimental.pallas import tpu as pltpu

NEG_SLOPE = 0.01  # torch.nn.LeakyReLU default negative_slope


def _make_kernel(C, W, TH, PAD):
    THW = TH * W

    def kernel(w_ref, mask_ref, halo_ref, xf_ref, fm_ref, out_ref, pad_ref):
        # w_ref:    (18,) f32 SMEM           conv weights, OIHW flattened
        # mask_ref: (2, THW) f32 VMEM        [left-valid, right-valid] column masks
        # halo_ref: (1, 1, 8, W) f32 VMEM    pre-pooled boundary rows:
        #           [xf_top_max, xf_top_mean, fm_top_max, fm_top_mean,
        #            xf_bot_max, xf_bot_mean, fm_bot_max, fm_bot_mean]
        # xf_ref / fm_ref / out_ref: (1, C, THW) lane-dense tile blocks
        # pad_ref:  (4, PAD + THW + PAD) f32 VMEM scratch (rows: max_f, mean_f, max_m, mean_m)

        # ---- hoist the 18 conv weights once (scalar SMEM reads) -------------
        w = [w_ref[i] for i in range(18)]
        inv_c = 1.0 / C

        # ---- channel pooling of the tile; stage straight into the scratch ---
        xft = xf_ref[0].astype(jnp.float32)                       # (C, THW)
        pad_ref[0:1, PAD:PAD + THW] = jnp.max(xft, axis=0, keepdims=True)
        pad_ref[1:2, PAD:PAD + THW] = jnp.sum(xft, axis=0, keepdims=True) * inv_c
        fmt = fm_ref[0].astype(jnp.float32)                       # (C, THW)
        pad_ref[2:3, PAD:PAD + THW] = jnp.max(fmt, axis=0, keepdims=True)
        pad_ref[3:4, PAD:PAD + THW] = jnp.sum(fmt, axis=0, keepdims=True) * inv_c

        # ---- zero ONLY the halo columns, then drop in the pooled halo rows ---
        pad_ref[:, 0:PAD] = jnp.zeros((4, PAD), jnp.float32)
        pad_ref[:, PAD + THW:PAD + THW + PAD] = jnp.zeros((4, PAD), jnp.float32)
        halo = halo_ref[0, 0]                                     # (8, W) f32
        pad_ref[:, PAD - W:PAD] = halo[0:4]                       # row above the tile
        pad_ref[:, PAD + THW:PAD + THW + W] = halo[4:8]           # row below the tile

        # ---- column-boundary masks (only 2 rows; kx==1 taps need none) -------
        left_ok = mask_ref[0:1, :]                                # (1, THW)
        right_ok = mask_ref[1:2, :]

        # ---- 3x3 conv (2 in-ch, 1 out-ch, pad=1, no bias), taps shared -------
        xf_acc = jnp.zeros((1, THW), jnp.float32)
        fm_acc = jnp.zeros((1, THW), jnp.float32)
        for ky in range(3):
            for kx in range(3):
                t = ky * 3 + kx
                s = (ky - 1) * W + (kx - 1)
                win = pad_ref[:, PAD + s:PAD + s + THW]           # (4, THW)
                xf_c = w[t] * win[0:1, :] + w[9 + t] * win[1:2, :]
                fm_c = w[t] * win[2:3, :] + w[9 + t] * win[3:4, :]
                if kx == 0:
                    xf_c = xf_c * left_ok
                    fm_c = fm_c * left_ok
                elif kx == 2:
                    xf_c = xf_c * right_ok
                    fm_c = fm_c * right_ok
                xf_acc = xf_acc + xf_c
                fm_acc = fm_acc + fm_c

        # ---- LeakyReLU + recombination (re-read tiles from VMEM refs) --------
        xf_att = jnp.where(xf_acc > 0, xf_acc, NEG_SLOPE * xf_acc)   # (1, THW)
        fm_att = jnp.where(fm_acc > 0, fm_acc, NEG_SLOPE * fm_acc)
        out = (xf_att * xf_ref[0].astype(jnp.float32) +
               fm_att * fm_ref[0].astype(jnp.float32))               # (C, THW)
        out_ref[0] = out.astype(out_ref.dtype)

    return kernel


def _pick_tile_rows(H, W, C, itemsize=4):
    """Largest divisor of H whose (C, TH*W) block is <= ~1 MiB, with TH*W lane-aligned."""
    target = max(1, (1 << 20) // max(1, C * W * itemsize))
    cands = [d for d in range(1, H + 1)
             if H % d == 0 and (d * W) % 128 == 0 and d <= target]
    return max(cands) if cands else H


def spatial_attention(xf, fm, conv_weight, *, tile_rows=None):
    """xf, fm: (B, C, H, W).  conv_weight: (1, 2, 3, 3) f32 (OIHW, bias-free)."""
    B, C, H, W = xf.shape
    HW = H * W

    if tile_rows is None:
        tile_rows = _pick_tile_rows(H, W, C)
    TH = int(tile_rows)
    assert H % TH == 0, "tile_rows must divide H"
    assert (TH * W) % 128 == 0 or TH == H, "tile must be lane-aligned (TH*W % 128 == 0)"
    NH = H // TH
    THW = TH * W
    PAD = ((W + 1 + 127) // 128) * 128            # lane-aligned halo >= W+1

    # Lane-dense views of the big arrays (free reshape).
    xf2 = xf.reshape(B, C, HW)
    fm2 = fm.reshape(B, C, HW)
    w_flat = conv_weight.reshape(-1).astype(jnp.float32)          # (18,)

    # ---- pre-pooled 1-row halos per tile (reads only 2*NH rows of each input) ----
    def boundary_pooled(x):
        x32 = x.astype(jnp.float32)
        above = x32[:, :, TH - 1:H - 1:TH, :]     # rows above tiles 1..NH-1
        below = x32[:, :, TH:H:TH, :]             # rows below tiles 0..NH-2
        zero = jnp.zeros((B, 1, W), jnp.float32)
        top_max = jnp.concatenate([zero, jnp.max(above, axis=1)], axis=1)   # (B, NH, W)
        top_mean = jnp.concatenate([zero, jnp.mean(above, axis=1)], axis=1)
        bot_max = jnp.concatenate([jnp.max(below, axis=1), zero], axis=1)
        bot_mean = jnp.concatenate([jnp.mean(below, axis=1), zero], axis=1)
        return (jnp.stack([top_max, top_mean], axis=2),           # (B, NH, 2, W)
                jnp.stack([bot_max, bot_mean], axis=2))

    top_f, bot_f = boundary_pooled(xf)
    top_m, bot_m = boundary_pooled(fm)
    halo = jnp.concatenate([top_f, top_m, bot_f, bot_m], axis=2)  # (B, NH, 8, W)

    # ---- 2 column-boundary masks (tile-invariant; fetched once, stays resident) ----
    col = jnp.arange(THW, dtype=jnp.int32) % W
    masks = jnp.stack([col > 0, col < W - 1], axis=0).astype(jnp.float32)   # (2, THW)

    img_spec = pl.BlockSpec((1, C, THW), lambda b, i: (b, 0, i))
    itemsize = jnp.dtype(xf.dtype).itemsize
    cost = pl.CostEstimate(
        flops=int(B * HW * (8 * C + 80)),
        transcendentals=0,
        bytes_accessed=int(3 * B * C * HW * itemsize),
    )

    out = pl.pallas_call(
        _make_kernel(C, W, TH, PAD),
        out_shape=jax.ShapeDtypeStruct((B, C, HW), xf.dtype),
        grid_spec=pltpu.PrefetchScalarGridSpec(
            num_scalar_prefetch=0,
            grid=(B, NH),
            in_specs=[
                pl.BlockSpec(memory_space=pltpu.MemorySpace.SMEM),         # weights
                pl.BlockSpec((2, THW), lambda b, i: (0, 0)),               # column masks
                pl.BlockSpec((1, 1, 8, W), lambda b, i: (b, i, 0, 0)),     # pooled halos
                img_spec,                                                  # xf tile
                img_spec,                                                  # fm tile
            ],
            out_specs=img_spec,
            scratch_shapes=[pltpu.VMEM((4, PAD + THW + PAD), jnp.float32)],
        ),
        compiler_params=pltpu.CompilerParams(
            dimension_semantics=("parallel", "parallel"),
            vmem_limit_bytes=40 * 1024 * 1024,
        ),
        cost_estimate=cost,
    )(w_flat, masks, halo, xf2, fm2)

    return out.reshape(B, C, H, W)


def spatial_attention_ref(xf, fm, conv_weight):
    # Pure-JAX reference for validation.
    def pool(x):
        return jnp.concatenate(
            [jnp.max(x, axis=1, keepdims=True),
             jnp.mean(x, axis=1, keepdims=True)], axis=1)       # (B, 2, H, W)

    def conv(x):
        return lax.conv_general_dilated(
            x, conv_weight, window_strides=(1, 1), padding=((1, 1), (1, 1)),
            dimension_numbers=("NCHW", "OIHW", "NCHW"))

    def leaky(x):
        return jnp.where(x > 0, x, NEG_SLOPE * x)

    xf_att = leaky(conv(pool(xf)))   # (B, 1, H, W)
    fm_att = leaky(conv(pool(fm)))
    return xf_att * xf + fm_att * fm


if __name__ == "__main__":
    key = jax.random.PRNGKey(0)
    k_xf, k_fm, k_w = jax.random.split(key, 3)

    B, C, H, W = 2, 4, 16, 16
    xf = jax.random.normal(k_xf, (B, C, H, W), dtype=jnp.float32)
    fm = jax.random.normal(k_fm, (B, C, H, W), dtype=jnp.float32)

    # Deterministic Conv2d(2, 1, 3, padding=1, bias=False) weight init
    # (uniform in +/- 1/sqrt(fan_in), fan_in = 2*3*3 = 18).
    bound = 1.0 / (18.0 ** 0.5)
    conv_weight = jax.random.uniform(
        k_w, (1, 2, 3, 3), dtype=jnp.float32, minval=-bound, maxval=bound)

    ref = spatial_attention_ref(xf, fm, conv_weight)

    # Tiled path (2 H-tiles per image: exercises top-boundary, bottom-boundary
    # and the pooled-halo plumbing).
    out_tiled = jax.block_until_ready(
        spatial_attention(xf, fm, conv_weight, tile_rows=8))
    # Auto tile size (falls back to a single full-image tile at this shape).
    out_auto = jax.block_until_ready(spatial_attention(xf, fm, conv_weight))

    assert out_tiled.shape == (B, C, H, W)
    assert jnp.allclose(out_tiled, ref, atol=1e-5, rtol=1e-5), "tiled mismatch vs reference"
    assert jnp.allclose(out_auto, ref, atol=1e-5, rtol=1e-5), "auto mismatch vs reference"

    print("KERNEL_OK")
</pallas_src>

<mosaic_0001>
module attributes {stable_mosaic.version = 11 : i64} {
  func.func @kernel(%arg0: i32, %arg1: i32, %arg2: memref<18xf32, #tpu.memory_space<smem>>, %arg3: memref<2x128xf32, #tpu.memory_space<vmem>>, %arg4: memref<1x1x8x16xf32, #tpu.memory_space<vmem>>, %arg5: memref<1x4x128xf32, #tpu.memory_space<vmem>>, %arg6: memref<1x4x128xf32, #tpu.memory_space<vmem>>, %arg7: memref<1x4x128xf32, #tpu.memory_space<vmem>>, %arg8: memref<4x384xf32, #tpu.memory_space<vmem>>) attributes {dimension_semantics = [#tpu.dimension_semantics<parallel>, #tpu.dimension_semantics<parallel>], iteration_bounds = array<i64: 2, 2>, scalar_prefetch = 0 : i64, scratch_operands = 1 : i64, tpu.core_type = #tpu.core_type<tc>, window_params = [{transform_indices = @transform_0, window_bounds = array<i64: 18>}, {pipeline_mode = #tpu.pipeline_mode<synchronous>, transform_indices = @transform_1, window_bounds = array<i64: 2, 128>}, {transform_indices = @transform_2, window_bounds = array<i64: 1, 1, 8, 16>}, {transform_indices = @transform_3, window_bounds = array<i64: 1, 4, 128>}, {transform_indices = @transform_4, window_bounds = array<i64: 1, 4, 128>}, {transform_indices = @transform_5, window_bounds = array<i64: 1, 4, 128>}]} {
    %c0 = arith.constant 0 : index
    %0 = memref.load %arg2[%c0] : memref<18xf32, #tpu.memory_space<smem>>
    %c1 = arith.constant 1 : index
    %1 = memref.load %arg2[%c1] : memref<18xf32, #tpu.memory_space<smem>>
    %c2 = arith.constant 2 : index
    %2 = memref.load %arg2[%c2] : memref<18xf32, #tpu.memory_space<smem>>
    %c3 = arith.constant 3 : index
    %3 = memref.load %arg2[%c3] : memref<18xf32, #tpu.memory_space<smem>>
    %c4 = arith.constant 4 : index
    %4 = memref.load %arg2[%c4] : memref<18xf32, #tpu.memory_space<smem>>
    %c5 = arith.constant 5 : index
    %5 = memref.load %arg2[%c5] : memref<18xf32, #tpu.memory_space<smem>>
    %c6 = arith.constant 6 : index
    %6 = memref.load %arg2[%c6] : memref<18xf32, #tpu.memory_space<smem>>
    %c7 = arith.constant 7 : index
    %7 = memref.load %arg2[%c7] : memref<18xf32, #tpu.memory_space<smem>>
    %c8 = arith.constant 8 : index
    %8 = memref.load %arg2[%c8] : memref<18xf32, #tpu.memory_space<smem>>
    %c9 = arith.constant 9 : index
    %9 = memref.load %arg2[%c9] : memref<18xf32, #tpu.memory_space<smem>>
    %c10 = arith.constant 10 : index
    %10 = memref.load %arg2[%c10] : memref<18xf32, #tpu.memory_space<smem>>
    %c11 = arith.constant 11 : index
    %11 = memref.load %arg2[%c11] : memref<18xf32, #tpu.memory_space<smem>>
    %c12 = arith.constant 12 : index
    %12 = memref.load %arg2[%c12] : memref<18xf32, #tpu.memory_space<smem>>
    %c13 = arith.constant 13 : index
    %13 = memref.load %arg2[%c13] : memref<18xf32, #tpu.memory_space<smem>>
    %c14 = arith.constant 14 : index
    %14 = memref.load %arg2[%c14] : memref<18xf32, #tpu.memory_space<smem>>
    %c15 = arith.constant 15 : index
    %15 = memref.load %arg2[%c15] : memref<18xf32, #tpu.memory_space<smem>>
    %c16 = arith.constant 16 : index
    %16 = memref.load %arg2[%c16] : memref<18xf32, #tpu.memory_space<smem>>
    %c17 = arith.constant 17 : index
    %17 = memref.load %arg2[%c17] : memref<18xf32, #tpu.memory_space<smem>>
    %c0_0 = arith.constant 0 : index
    %c0_1 = arith.constant 0 : index
    %c0_2 = arith.constant 0 : index
    %18 = vector.load %arg5[%c0_0, %c0_1, %c0_2] : memref<1x4x128xf32, #tpu.memory_space<vmem>>, vector<1x4x128xf32>
    %19 = vector.shape_cast %18 : vector<1x4x128xf32> to vector<4x128xf32>
    %cst = arith.constant dense<0xFF800000> : vector<128xf32>
    %20 = vector.multi_reduction <maximumf>, %19, %cst [0] : vector<4x128xf32> to vector<128xf32>
    %21 = vector.shape_cast %20 : vector<128xf32> to vector<1x128xf32>
    %c0_3 = arith.constant 0 : index
    %c128 = arith.constant 128 : index
    %22 = vector.load %arg8[%c0_3, %c128] : memref<4x384xf32, #tpu.memory_space<vmem>>, vector<1x128xf32>
    tpu.vector_store %arg8[%c0_3, %c128], %21 {strides = array<i32>} : memref<4x384xf32, #tpu.memory_space<vmem>>, vector<1x128xf32>,
    %cst_4 = arith.constant dense<0.000000e+00> : vector<128xf32>
    %23 = vector.multi_reduction <add>, %19, %cst_4 [0] : vector<4x128xf32> to vector<128xf32>
    %24 = vector.shape_cast %23 : vector<128xf32> to vector<1x128xf32>
    %cst_5 = arith.constant 2.500000e-01 : f32
    %25 = vector.broadcast %cst_5 : f32 to vector<1x128xf32>
    %26 = arith.mulf %24, %25 : vector<1x128xf32>
    %c1_6 = arith.constant 1 : index
    %c128_7 = arith.constant 128 : index
    %27 = vector.load %arg8[%c1_6, %c128_7] : memref<4x384xf32, #tpu.memory_space<vmem>>, vector<1x128xf32>
    tpu.vector_store %arg8[%c1_6, %c128_7], %26 {strides = array<i32>} : memref<4x384xf32, #tpu.memory_space<vmem>>, vector<1x128xf32>,
    %c0_8 = arith.constant 0 : index
    %c0_9 = arith.constant 0 : index
    %c0_10 = arith.constant 0 : index
    %28 = vector.load %arg6[%c0_8, %c0_9, %c0_10] : memref<1x4x128xf32, #tpu.memory_space<vmem>>, vector<1x4x128xf32>
    %29 = vector.shape_cast %28 : vector<1x4x128xf32> to vector<4x128xf32>
    %cst_11 = arith.constant dense<0xFF800000> : vector<128xf32>
    %30 = vector.multi_reduction <maximumf>, %29, %cst_11 [0] : vector<4x128xf32> to vector<128xf32>
    %31 = vector.shape_cast %30 : vector<128xf32> to vector<1x128xf32>
    %c2_12 = arith.constant 2 : index
    %c128_13 = arith.constant 128 : index
    %32 = vector.load %arg8[%c2_12, %c128_13] : memref<4x384xf32, #tpu.memory_space<vmem>>, vector<1x128xf32>
    tpu.vector_store %arg8[%c2_12, %c128_13], %31 {strides = array<i32>} : memref<4x384xf32, #tpu.memory_space<vmem>>, vector<1x128xf32>,
    %cst_14 = arith.constant dense<0.000000e+00> : vector<128xf32>
    %33 = vector.multi_reduction <add>, %29, %cst_14 [0] : vector<4x128xf32> to vector<128xf32>
    %34 = vector.shape_cast %33 : vector<128xf32> to vector<1x128xf32>
    %cst_15 = arith.constant 2.500000e-01 : f32
    %35 = vector.broadcast %cst_15 : f32 to vector<1x128xf32>
    %36 = arith.mulf %34, %35 : vector<1x128xf32>
    %c3_16 = arith.constant 3 : index
    %c128_17 = arith.constant 128 : index
    %37 = vector.load %arg8[%c3_16, %c128_17] : memref<4x384xf32, #tpu.memory_space<vmem>>, vector<1x128xf32>
    tpu.vector_store %arg8[%c3_16, %c128_17], %36 {strides = array<i32>} : memref<4x384xf32, #tpu.memory_space<vmem>>, vector<1x128xf32>,
    %cst_18 = arith.constant 0.000000e+00 : f32
    %38 = vector.broadcast %cst_18 : f32 to vector<4x128xf32>
    %c0_19 = arith.constant 0 : index
    %c0_20 = arith.constant 0 : index
    %39 = vector.load %arg8[%c0_19, %c0_20] : memref<4x384xf32, #tpu.memory_space<vmem>>, vector<4x128xf32>
    tpu.vector_store %arg8[%c0_19, %c0_20], %38 {strides = array<i32>} : memref<4x384xf32, #tpu.memory_space<vmem>>, vector<4x128xf32>,
    %cst_21 = arith.constant 0.000000e+00 : f32
    %40 = vector.broadcast %cst_21 : f32 to vector<4x128xf32>
    %c0_22 = arith.constant 0 : index
    %c256 = arith.constant 256 : index
    %41 = vector.load %arg8[%c0_22, %c256] : memref<4x384xf32, #tpu.memory_space<vmem>>, vector<4x128xf32>
    tpu.vector_store %arg8[%c0_22, %c256], %40 {strides = array<i32>} : memref<4x384xf32, #tpu.memory_space<vmem>>, vector<4x128xf32>,
    %c0_23 = arith.constant 0 : index
    %c0_24 = arith.constant 0 : index
    %c0_25 = arith.constant 0 : index
    %c0_26 = arith.constant 0 : index
    %42 = vector.load %arg4[%c0_23, %c0_24, %c0_25, %c0_26] : memref<1x1x8x16xf32, #tpu.memory_space<vmem>>, vector<1x1x8x16xf32>
    %43 = vector.shape_cast %42 : vector<1x1x8x16xf32> to vector<8x16xf32>
    %44 = vector.extract_strided_slice %43 {offsets = [0, 0], sizes = [4, 16], strides = [1, 1]} : vector<8x16xf32> to vector<4x16xf32>
    %c0_27 = arith.constant 0 : index
    %c112 = arith.constant 112 : index
    %45 = vector.load %arg8[%c0_27, %c112] : memref<4x384xf32, #tpu.memory_space<vmem>>, vector<4x16xf32>
    tpu.vector_store %arg8[%c0_27, %c112], %44 {strides = array<i32>} : memref<4x384xf32, #tpu.memory_space<vmem>>, vector<4x16xf32>,
    %46 = vector.extract_strided_slice %43 {offsets = [4, 0], sizes = [4, 16], strides = [1, 1]} : vector<8x16xf32> to vector<4x16xf32>
    %c0_28 = arith.constant 0 : index
    %c256_29 = arith.constant 256 : index
    %47 = vector.load %arg8[%c0_28, %c256_29] : memref<4x384xf32, #tpu.memory_space<vmem>>, vector<4x16xf32>
    tpu.vector_store %arg8[%c0_28, %c256_29], %46 {strides = array<i32>} : memref<4x384xf32, #tpu.memory_space<vmem>>, vector<4x16xf32>,
    %c0_30 = arith.constant 0 : index
    %c0_31 = arith.constant 0 : index
    %48 = vector.load %arg3[%c0_30, %c0_31] : memref<2x128xf32, #tpu.memory_space<vmem>>, vector<1x128xf32>
    %c1_32 = arith.constant 1 : index
    %c0_33 = arith.constant 0 : index
    %49 = vector.load %arg3[%c1_32, %c0_33] : memref<2x128xf32, #tpu.memory_space<vmem>>, vector<1x128xf32>
    %cst_34 = arith.constant 0.000000e+00 : f32
    %50 = vector.broadcast %cst_34 : f32 to vector<1x128xf32>
    %cst_35 = arith.constant 0.000000e+00 : f32
    %51 = vector.broadcast %cst_35 : f32 to vector<1x128xf32>
    %c0_36 = arith.constant 0 : index
    %c111 = arith.constant 111 : index
    %52 = vector.load %arg8[%c0_36, %c111] : memref<4x384xf32, #tpu.memory_space<vmem>>, vector<4x128xf32>
    %53 = vector.extract_strided_slice %52 {offsets = [0, 0], sizes = [1, 128], strides = [1, 1]} : vector<4x128xf32> to vector<1x128xf32>
    %54 = vector.broadcast %0 : f32 to vector<1x128xf32>
    %55 = arith.mulf %54, %53 : vector<1x128xf32>
    %56 = vector.extract_strided_slice %52 {offsets = [1, 0], sizes = [1, 128], strides = [1, 1]} : vector<4x128xf32> to vector<1x128xf32>
    %57 = vector.broadcast %9 : f32 to vector<1x128xf32>
    %58 = arith.mulf %57, %56 : vector<1x128xf32>
    %59 = arith.addf %55, %58 : vector<1x128xf32>
    %60 = vector.extract_strided_slice %52 {offsets = [2, 0], sizes = [1, 128], strides = [1, 1]} : vector<4x128xf32> to vector<1x128xf32>
    %61 = vector.broadcast %0 : f32 to vector<1x128xf32>
    %62 = arith.mulf %61, %60 : vector<1x128xf32>
    %63 = vector.extract_strided_slice %52 {offsets = [3, 0], sizes = [1, 128], strides = [1, 1]} : vector<4x128xf32> to vector<1x128xf32>
    %64 = vector.broadcast %9 : f32 to vector<1x128xf32>
    %65 = arith.mulf %64, %63 : vector<1x128xf32>
    %66 = arith.addf %62, %65 : vector<1x128xf32>
    %67 = arith.mulf %59, %48 : vector<1x128xf32>
    %68 = arith.mulf %66, %48 : vector<1x128xf32>
    %69 = arith.addf %50, %67 : vector<1x128xf32>
    %70 = arith.addf %51, %68 : vector<1x128xf32>
    %c0_37 = arith.constant 0 : index
    %c112_38 = arith.constant 112 : index
    %71 = vector.load %arg8[%c0_37, %c112_38] : memref<4x384xf32, #tpu.memory_space<vmem>>, vector<4x128xf32>
    %72 = vector.extract_strided_slice %71 {offsets = [0, 0], sizes = [1, 128], strides = [1, 1]} : vector<4x128xf32> to vector<1x128xf32>
    %73 = vector.broadcast %1 : f32 to vector<1x128xf32>
    %74 = arith.mulf %73, %72 : vector<1x128xf32>
    %75 = vector.extract_strided_slice %71 {offsets = [1, 0], sizes = [1, 128], strides = [1, 1]} : vector<4x128xf32> to vector<1x128xf32>
    %76 = vector.broadcast %10 : f32 to vector<1x128xf32>
    %77 = arith.mulf %76, %75 : vector<1x128xf32>
    %78 = arith.addf %74, %77 : vector<1x128xf32>
    %79 = vector.extract_strided_slice %71 {offsets = [2, 0], sizes = [1, 128], strides = [1, 1]} : vector<4x128xf32> to vector<1x128xf32>
    %80 = vector.broadcast %1 : f32 to vector<1x128xf32>
    %81 = arith.mulf %80, %79 : vector<1x128xf32>
    %82 = vector.extract_strided_slice %71 {offsets = [3, 0], sizes = [1, 128], strides = [1, 1]} : vector<4x128xf32> to vector<1x128xf32>
    %83 = vector.broadcast %10 : f32 to vector<1x128xf32>
    %84 = arith.mulf %83, %82 : vector<1x128xf32>
    %85 = arith.addf %81, %84 : vector<1x128xf32>
    %86 = arith.addf %69, %78 : vector<1x128xf32>
    %87 = arith.addf %70, %85 : vector<1x128xf32>
    %c0_39 = arith.constant 0 : index
    %c113 = arith.constant 113 : index
    %88 = vector.load %arg8[%c0_39, %c113] : memref<4x384xf32, #tpu.memory_space<vmem>>, vector<4x128xf32>
    %89 = vector.extract_strided_slice %88 {offsets = [0, 0], sizes = [1, 128], strides = [1, 1]} : vector<4x128xf32> to vector<1x128xf32>
    %90 = vector.broadcast %2 : f32 to vector<1x128xf32>
    %91 = arith.mulf %90, %89 : vector<1x128xf32>
    %92 = vector.extract_strided_slice %88 {offsets = [1, 0], sizes = [1, 128], strides = [1, 1]} : vector<4x128xf32> to vector<1x128xf32>
    %93 = vector.broadcast %11 : f32 to vector<1x128xf32>
    %94 = arith.mulf %93, %92 : vector<1x128xf32>
    %95 = arith.addf %91, %94 : vector<1x128xf32>
    %96 = vector.extract_strided_slice %88 {offsets = [2, 0], sizes = [1, 128], strides = [1, 1]} : vector<4x128xf32> to vector<1x128xf32>
    %97 = vector.broadcast %2 : f32 to vector<1x128xf32>
    %98 = arith.mulf %97, %96 : vector<1x128xf32>
    %99 = vector.extract_strided_slice %88 {offsets = [3, 0], sizes = [1, 128], strides = [1, 1]} : vector<4x128xf32> to vector<1x128xf32>
    %100 = vector.broadcast %11 : f32 to vector<1x128xf32>
    %101 = arith.mulf %100, %99 : vector<1x128xf32>
    %102 = arith.addf %98, %101 : vector<1x128xf32>
    %103 = arith.mulf %95, %49 : vector<1x128xf32>
    %104 = arith.mulf %102, %49 : vector<1x128xf32>
    %105 = arith.addf %86, %103 : vector<1x128xf32>
    %106 = arith.addf %87, %104 : vector<1x128xf32>
    %c0_40 = arith.constant 0 : index
    %c127 = arith.constant 127 : index
    %107 = vector.load %arg8[%c0_40, %c127] : memref<4x384xf32, #tpu.memory_space<vmem>>, vector<4x128xf32>
    %108 = vector.extract_strided_slice %107 {offsets = [0, 0], sizes = [1, 128], strides = [1, 1]} : vector<4x128xf32> to vector<1x128xf32>
    %109 = vector.broadcast %3 : f32 to vector<1x128xf32>
    %110 = arith.mulf %109, %108 : vector<1x128xf32>
    %111 = vector.extract_strided_slice %107 {offsets = [1, 0], sizes = [1, 128], strides = [1, 1]} : vector<4x128xf32> to vector<1x128xf32>
    %112 = vector.broadcast %12 : f32 to vector<1x128xf32>
    %113 = arith.mulf %112, %111 : vector<1x128xf32>
    %114 = arith.addf %110, %113 : vector<1x128xf32>
    %115 = vector.extract_strided_slice %107 {offsets = [2, 0], sizes = [1, 128], strides = [1, 1]} : vector<4x128xf32> to vector<1x128xf32>
    %116 = vector.broadcast %3 : f32 to vector<1x128xf32>
    %117 = arith.mulf %116, %115 : vector<1x128xf32>
    %118 = vector.extract_strided_slice %107 {offsets = [3, 0], sizes = [1, 128], strides = [1, 1]} : vector<4x128xf32> to vector<1x128xf32>
    %119 = vector.broadcast %12 : f32 to vector<1x128xf32>
    %120 = arith.mulf %119, %118 : vector<1x128xf32>
    %121 = arith.addf %117, %120 : vector<1x128xf32>
    %122 = arith.mulf %114, %48 : vector<1x128xf32>
    %123 = arith.mulf %121, %48 : vector<1x128xf32>
    %124 = arith.addf %105, %122 : vector<1x128xf32>
    %125 = arith.addf %106, %123 : vector<1x128xf32>
    %c0_41 = arith.constant 0 : index
    %c128_42 = arith.constant 128 : index
    %126 = vector.load %arg8[%c0_41, %c128_42] : memref<4x384xf32, #tpu.memory_space<vmem>>, vector<4x128xf32>
    %127 = vector.extract_strided_slice %126 {offsets = [0, 0], sizes = [1, 128], strides = [1, 1]} : vector<4x128xf32> to vector<1x128xf32>
    %128 = vector.broadcast %4 : f32 to vector<1x128xf32>
    %129 = arith.mulf %128, %127 : vector<1x128xf32>
    %130 = vector.extract_strided_slice %126 {offsets = [1, 0], sizes = [1, 128], strides = [1, 1]} : vector<4x128xf32> to vector<1x128xf32>
    %131 = vector.broadcast %13 : f32 to vector<1x128xf32>
    %132 = arith.mulf %131, %130 : vector<1x128xf32>
    %133 = arith.addf %129, %132 : vector<1x128xf32>
    %134 = vector.extract_strided_slice %126 {offsets = [2, 0], sizes = [1, 128], strides = [1, 1]} : vector<4x128xf32> to vector<1x128xf32>
    %135 = vector.broadcast %4 : f32 to vector<1x128xf32>
    %136 = arith.mulf %135, %134 : vector<1x128xf32>
    %137 = vector.extract_strided_slice %126 {offsets = [3, 0], sizes = [1, 128], strides = [1, 1]} : vector<4x128xf32> to vector<1x128xf32>
    %138 = vector.broadcast %13 : f32 to vector<1x128xf32>
    %139 = arith.mulf %138, %137 : vector<1x128xf32>
    %140 = arith.addf %136, %139 : vector<1x128xf32>
    %141 = arith.addf %124, %133 : vector<1x128xf32>
    %142 = arith.addf %125, %140 : vector<1x128xf32>
    %c0_43 = arith.constant 0 : index
    %c129 = arith.constant 129 : index
    %143 = vector.load %arg8[%c0_43, %c129] : memref<4x384xf32, #tpu.memory_space<vmem>>, vector<4x128xf32>
    %144 = vector.extract_strided_slice %143 {offsets = [0, 0], sizes = [1, 128], strides = [1, 1]} : vector<4x128xf32> to vector<1x128xf32>
    %145 = vector.broadcast %5 : f32 to vector<1x128xf32>
    %146 = arith.mulf %145, %144 : vector<1x128xf32>
    %147 = vector.extract_strided_slice %143 {offsets = [1, 0], sizes = [1, 128], strides = [1, 1]} : vector<4x128xf32> to vector<1x128xf32>
    %148 = vector.broadcast %14 : f32 to vector<1x128xf32>
    %149 = arith.mulf %148, %147 : vector<1x128xf32>
    %150 = arith.addf %146, %149 : vector<1x128xf32>
    %151 = vector.extract_strided_slice %143 {offsets = [2, 0], sizes = [1, 128], strides = [1, 1]} : vector<4x128xf32> to vector<1x128xf32>
    %152 = vector.broadcast %5 : f32 to vector<1x128xf32>
    %153 = arith.mulf %152, %151 : vector<1x128xf32>
    %154 = vector.extract_strided_slice %143 {offsets = [3, 0], sizes = [1, 128], strides = [1, 1]} : vector<4x128xf32> to vector<1x128xf32>
    %155 = vector.broadcast %14 : f32 to vector<1x128xf32>
    %156 = arith.mulf %155, %154 : vector<1x128xf32>
    %157 = arith.addf %153, %156 : vector<1x128xf32>
    %158 = arith.mulf %150, %49 : vector<1x128xf32>
    %159 = arith.mulf %157, %49 : vector<1x128xf32>
    %160 = arith.addf %141, %158 : vector<1x128xf32>
    %161 = arith.addf %142, %159 : vector<1x128xf32>
    %c0_44 = arith.constant 0 : index
    %c143 = arith.constant 143 : index
    %162 = vector.load %arg8[%c0_44, %c143] : memref<4x384xf32, #tpu.memory_space<vmem>>, vector<4x128xf32>
    %163 = vector.extract_strided_slice %162 {offsets = [0, 0], sizes = [1, 128], strides = [1, 1]} : vector<4x128xf32> to vector<1x128xf32>
    %164 = vector.broadcast %6 : f32 to vector<1x128xf32>
    %165 = arith.mulf %164, %163 : vector<1x128xf32>
    %166 = vector.extract_strided_slice %162 {offsets = [1, 0], sizes = [1, 128], strides = [1, 1]} : vector<4x128xf32> to vector<1x128xf32>
    %167 = vector.broadcast %15 : f32 to vector<1x128xf32>
    %168 = arith.mulf %167, %166 : vector<1x128xf32>
    %169 = arith.addf %165, %168 : vector<1x128xf32>
    %170 = vector.extract_strided_slice %162 {offsets = [2, 0], sizes = [1, 128], strides = [1, 1]} : vector<4x128xf32> to vector<1x128xf32>
    %171 = vector.broadcast %6 : f32 to vector<1x128xf32>
    %172 = arith.mulf %171, %170 : vector<1x128xf32>
    %173 = vector.extract_strided_slice %162 {offsets = [3, 0], sizes = [1, 128], strides = [1, 1]} : vector<4x128xf32> to vector<1x128xf32>
    %174 = vector.broadcast %15 : f32 to vector<1x128xf32>
    %175 = arith.mulf %174, %173 : vector<1x128xf32>
    %176 = arith.addf %172, %175 : vector<1x128xf32>
    %177 = arith.mulf %169, %48 : vector<1x128xf32>
    %178 = arith.mulf %176, %48 : vector<1x128xf32>
    %179 = arith.addf %160, %177 : vector<1x128xf32>
    %180 = arith.addf %161, %178 : vector<1x128xf32>
    %c0_45 = arith.constant 0 : index
    %c144 = arith.constant 144 : index
    %181 = vector.load %arg8[%c0_45, %c144] : memref<4x384xf32, #tpu.memory_space<vmem>>, vector<4x128xf32>
    %182 = vector.extract_strided_slice %181 {offsets = [0, 0], sizes = [1, 128], strides = [1, 1]} : vector<4x128xf32> to vector<1x128xf32>
    %183 = vector.broadcast %7 : f32 to vector<1x128xf32>
    %184 = arith.mulf %183, %182 : vector<1x128xf32>
    %185 = vector.extract_strided_slice %181 {offsets = [1, 0], sizes = [1, 128], strides = [1, 1]} : vector<4x128xf32> to vector<1x128xf32>
    %186 = vector.broadcast %16 : f32 to vector<1x128xf32>
    %187 = arith.mulf %186, %185 : vector<1x128xf32>
    %188 = arith.addf %184, %187 : vector<1x128xf32>
    %189 = vector.extract_strided_slice %181 {offsets = [2, 0], sizes = [1, 128], strides = [1, 1]} : vector<4x128xf32> to vector<1x128xf32>
    %190 = vector.broadcast %7 : f32 to vector<1x128xf32>
    %191 = arith.mulf %190, %189 : vector<1x128xf32>
    %192 = vector.extract_strided_slice %181 {offsets = [3, 0], sizes = [1, 128], strides = [1, 1]} : vector<4x128xf32> to vector<1x128xf32>
    %193 = vector.broadcast %16 : f32 to vector<1x128xf32>
    %194 = arith.mulf %193, %192 : vector<1x128xf32>
    %195 = arith.addf %191, %194 : vector<1x128xf32>
    %196 = arith.addf %179, %188 : vector<1x128xf32>
    %197 = arith.addf %180, %195 : vector<1x128xf32>
    %c0_46 = arith.constant 0 : index
    %c145 = arith.constant 145 : index
    %198 = vector.load %arg8[%c0_46, %c145] : memref<4x384xf32, #tpu.memory_space<vmem>>, vector<4x128xf32>
    %199 = vector.extract_strided_slice %198 {offsets = [0, 0], sizes = [1, 128], strides = [1, 1]} : vector<4x128xf32> to vector<1x128xf32>
    %200 = vector.broadcast %8 : f32 to vector<1x128xf32>
    %201 = arith.mulf %200, %199 : vector<1x128xf32>
    %202 = vector.extract_strided_slice %198 {offsets = [1, 0], sizes = [1, 128], strides = [1, 1]} : vector<4x128xf32> to vector<1x128xf32>
    %203 = vector.broadcast %17 : f32 to vector<1x128xf32>
    %204 = arith.mulf %203, %202 : vector<1x128xf32>
    %205 = arith.addf %201, %204 : vector<1x128xf32>
    %206 = vector.extract_strided_slice %198 {offsets = [2, 0], sizes = [1, 128], strides = [1, 1]} : vector<4x128xf32> to vector<1x128xf32>
    %207 = vector.broadcast %8 : f32 to vector<1x128xf32>
    %208 = arith.mulf %207, %206 : vector<1x128xf32>
    %209 = vector.extract_strided_slice %198 {offsets = [3, 0], sizes = [1, 128], strides = [1, 1]} : vector<4x128xf32> to vector<1x128xf32>
    %210 = vector.broadcast %17 : f32 to vector<1x128xf32>
    %211 = arith.mulf %210, %209 : vector<1x128xf32>
    %212 = arith.addf %208, %211 : vector<1x128xf32>
    %213 = arith.mulf %205, %49 : vector<1x128xf32>
    %214 = arith.mulf %212, %49 : vector<1x128xf32>
    %215 = arith.addf %196, %213 : vector<1x128xf32>
    %216 = arith.addf %197, %214 : vector<1x128xf32>
    %cst_47 = arith.constant 0.000000e+00 : f32
    %217 = vector.broadcast %cst_47 : f32 to vector<1x128xf32>
    %218 = arith.cmpf ogt, %215, %217 : vector<1x128xf32>
    %cst_48 = arith.constant 0.00999999977 : f32
    %219 = vector.broadcast %cst_48 : f32 to vector<1x128xf32>
    %220 = arith.mulf %219, %215 : vector<1x128xf32>
    %221 = arith.select %218, %215, %220 : vector<1x128xi1>, vector<1x128xf32>
    %cst_49 = arith.constant 0.000000e+00 : f32
    %222 = vector.broadcast %cst_49 : f32 to vector<1x128xf32>
    %223 = arith.cmpf ogt, %216, %222 : vector<1x128xf32>
    %cst_50 = arith.constant 0.00999999977 : f32
    %224 = vector.broadcast %cst_50 : f32 to vector<1x128xf32>
    %225 = arith.mulf %224, %216 : vector<1x128xf32>
    %226 = arith.select %223, %216, %225 : vector<1x128xi1>, vector<1x128xf32>
    %c0_51 = arith.constant 0 : index
    %c0_52 = arith.constant 0 : index
    %c0_53 = arith.constant 0 : index
    %227 = vector.load %arg5[%c0_51, %c0_52, %c0_53] : memref<1x4x128xf32, #tpu.memory_space<vmem>>, vector<1x4x128xf32>
    %228 = vector.shape_cast %227 : vector<1x4x128xf32> to vector<4x128xf32>
    %229 = vector.broadcast %221 : vector<1x128xf32> to vector<4x128xf32>
    %230 = arith.mulf %229, %228 : vector<4x128xf32>
    %c0_54 = arith.constant 0 : index
    %c0_55 = arith.constant 0 : index
    %c0_56 = arith.constant 0 : index
    %231 = vector.load %arg6[%c0_54, %c0_55, %c0_56] : memref<1x4x128xf32, #tpu.memory_space<vmem>>, vector<1x4x128xf32>
    %232 = vector.shape_cast %231 : vector<1x4x128xf32> to vector<4x128xf32>
    %233 = vector.broadcast %226 : vector<1x128xf32> to vector<4x128xf32>
    %234 = arith.mulf %233, %232 : vector<4x128xf32>
    %235 = arith.addf %230, %234 : vector<4x128xf32>
    %c0_57 = arith.constant 0 : index
    %c0_58 = arith.constant 0 : index
    %c0_59 = arith.constant 0 : index
    %236 = vector.load %arg7[%c0_57, %c0_58, %c0_59] : memref<1x4x128xf32, #tpu.memory_space<vmem>>, vector<1x4x128xf32>
    %237 = vector.shape_cast %236 : vector<1x4x128xf32> to vector<4x128xf32>
    %238 = vector.shape_cast %235 : vector<4x128xf32> to vector<1x4x128xf32>
    tpu.vector_store %arg7[%c0_57, %c0_58, %c0_59], %238 {strides = array<i32>} : memref<1x4x128xf32, #tpu.memory_space<vmem>>, vector<1x4x128xf32>,
    return
  }
  func.func @transform_0(%arg0: i32, %arg1: i32) -> i32 {
    %c0_i32 = arith.constant 0 : i32
    %c0_i32_0 = arith.constant 0 : i32
    return %c0_i32 : i32
  }
  func.func @transform_1(%arg0: i32, %arg1: i32) -> (i32, i32) {
    %c0_i32 = arith.constant 0 : i32
    %c0_i32_0 = arith.constant 0 : i32
    %c0_i32_1 = arith.constant 0 : i32
    return %c0_i32, %c0_i32_0 : i32, i32
  }
  func.func @transform_2(%arg0: i32, %arg1: i32) -> (i32, i32, i32, i32) {
    %c0_i32 = arith.constant 0 : i32
    %c0_i32_0 = arith.constant 0 : i32
    %c0_i32_1 = arith.constant 0 : i32
    return %arg0, %arg1, %c0_i32, %c0_i32_0 : i32, i32, i32, i32
  }
  func.func @transform_3(%arg0: i32, %arg1: i32) -> (i32, i32, i32) {
    %c0_i32 = arith.constant 0 : i32
    %c0_i32_0 = arith.constant 0 : i32
    return %arg0, %c0_i32, %arg1 : i32, i32, i32
  }
  func.func @transform_4(%arg0: i32, %arg1: i32) -> (i32, i32, i32) {
    %c0_i32 = arith.constant 0 : i32
    %c0_i32_0 = arith.constant 0 : i32
    return %arg0, %c0_i32, %arg1 : i32, i32, i32
  }
  func.func @transform_5(%arg0: i32, %arg1: i32) -> (i32, i32, i32) {
    %c0_i32 = arith.constant 0 : i32
    %c0_i32_0 = arith.constant 0 : i32
    return %arg0, %c0_i32, %arg1 : i32, i32, i32
  }
}

</mosaic_0001>

<llo_original>
// kernel: tpu_custom_call.1
$region0: #{tpu_custom_call.1}
  #allocation0 [shape = 'u32[]', space=smem, size = 0x4, offset = 0x4, fixed_abs, tag = 'smem constant byte address 0x4 - core index']
  #allocation1 [shape = 'u32[144,128]{1,0:T(1,128)}', space=vmem, size = 0x12000, scoped, tag = 'internal scratch']
  #allocation2 [shape = 'f32[4,384]{1,0:T(4,128)}', space=vmem, size = 0x1800, scoped, tag = 'scratch operand']
  %s0 = inlined_call_operand.hbm [shape: f32[18], index: 0, kind: input, shape index: {}]
  %s1 = inlined_call_operand.hbm [shape: f32[2,128], index: 1, kind: input, shape index: {}]
  %s2 = inlined_call_operand.hbm [shape: f32[2,2,8,16], index: 2, kind: input, shape index: {}]
  %s3 = inlined_call_operand.hbm [shape: f32[2,4,256], index: 3, kind: input, shape index: {}]
  %s4 = inlined_call_operand.hbm [shape: f32[2,4,256], index: 4, kind: input, shape index: {}]
  %s5 = inlined_call_operand.hbm [shape: f32[2,4,256], index: 5, kind: output, shape index: {}]
  %s6 = sld [smem:[#allocation0]]
  $region73: #{tpu_custom_call.1} parent=0
    _
  %s8 = ssub.s32 1, %s6
  %s9 = scalar_select 0, %s8, %s6
  $region1: #{tpu_custom_call.1} parent=0
    #allocation3 [shape = 'u8[512]{0}', space=smem, size = 0x200, scoped, tag = 'input window, operand 0, single buffered']
    #allocation4 [shape = 's32[2]{0}', space=sflag, size = 0x8, scoped, tag = 'scoped memory for tpu_custom_call.1']
    #allocation5 [shape = 's32[2]{0}', space=sflag, size = 0x8, scoped, tag = 'scoped memory for tpu_custom_call.1']
    #allocation6 [shape = 's32[2]{0}', space=sflag, size = 0x8, scoped, tag = 'scoped memory for tpu_custom_call.1']
    #allocation7 [shape = 'u8[1024]{0}', space=vmem, size = 0x400, scoped, tag = 'input window, operand 1, single buffered']
    #allocation8 [shape = 'u8[8192]{0}', space=vmem, size = 0x2000, scoped, tag = 'input window, operand 2']
    #allocation9 [shape = 's32[2]{0}', space=sflag, size = 0x8, scoped, tag = 'scoped memory for tpu_custom_call.1']
    #allocation10 [shape = 'u8[4096]{0}', space=vmem, size = 0x1000, scoped, tag = 'input window, operand 3']
    #allocation11 [shape = 'u8[4096]{0}', space=vmem, size = 0x1000, scoped, tag = 'input window, operand 4']
    #allocation12 [shape = 's32[2]{0}', space=sflag, size = 0x8, scoped, tag = 'scoped memory for tpu_custom_call.1']
    #allocation13 [shape = 'u8[4096]{0}', space=vmem, size = 0x1000, scoped, tag = 'output window, operand 0']
    %10 = vsyncpa [#allocation6], 0
    %11 = vsyncpa [#allocation4], 0
    %12 = vsyncpa [#allocation9], 0
    %s13 = scalar_lea.sflag [#allocation9], 1
    %14 = vsyncpa %s13, 0
    %15 = vsyncpa [#allocation12], 0
    %s16 = scalar_lea.sflag [#allocation12], 1
    %17 = vsyncpa %s16, 0
    %18 = vsyncpa [#allocation5], 0
    %s19 = scalar_lea.sflag [#allocation5], 1
    %20 = vsyncpa %s19, 0
    loop: start=0, step=1, limit=6
    $region2: #{tpu_custom_call.1} parent=1 // loop_pre_header
      _
    $region3: #{tpu_custom_call.1} parent=1 // loop_header
      %s22 = sphi 0, %s26
      %p23 = scmp.ge.s32.totalorder %s22, 6
      %s29 = sphi 0, %s41
      %s30 = sphi 0, %s37
      %s31 = sphi 0, %s29
      %s32 = sphi 0, %s30
      %s33 = sphi 0, %s31
      %s34 = sphi 0, %s32
      %s42 = sphi 0, %s42
      %s44 = sphi 0, %s42
      %s45 = sphi 0, %s44
      %s59 = sphi 0, %s45
      %s63 = sphi 0, %s63
      %s65 = sphi 0, %s63
      %s66 = sphi 0, %s65
      %s80 = sphi 0, %s66
      %s88 = sphi 0, %s90
      %s91 = sphi 0, %s88
      %s92 = sphi 0, %s91
      %s108 = sphi 0, %s92
      %s116 = sphi 0, %s118
      %s119 = sphi 0, %s116
      %s120 = sphi 0, %s119
      %s136 = sphi 0, %s120
      %s144 = sphi 0, %s146
      %s147 = sphi 0, %s144
      %s148 = sphi 0, %s147
      %s164 = sphi 0, %s148
      %s172 = sphi 0, %s174
      %s175 = sphi 0, %s172
      %s176 = sphi 0, %s175
      %s192 = sphi 0, %s176
    $region4: #{tpu_custom_call.1} parent=1 // loop_header_branch
      %25 = sbr.rel (%p23) target = $region8
    $region5: #{tpu_custom_call.1} parent=1 // loop_body
      %s27 = ssub.s32 %s22, 1
      %s28 = ssub.s32 %s22, 2
      %s35 = sadd.s32 1, %s30
      %p36 = scmp.ge.s32.totalorder %s35, 2
      %s37 = scalar_select %p36, 0, %s35
      %s38 = sadd.s32 1, %s29
      %s39 = scalar_select %p36, %s38, %s29
      %p40 = scmp.ge.s32.totalorder %s39, 2
      %s41 = scalar_select %p40, 0, %s39
      %s43 = sadd.s32 %s42, 1
      %p46 = scmp.eq.s32.totalorder %s22, 3
      %p47 = scmp.ne.s32.totalorder %s42, %s44
      %p48 = scmp.eq.s32.totalorder %s22, 0
      %p49 = por %p47, %p48
      %p50 = scmp.ne.s32.totalorder %s42, %s44
      %p51 = scmp.eq.s32.totalorder %s27, 3
      %p52 = por %p50, %p51
      %p53 = scmp.ne.s32.totalorder %s44, %s45
      %p54 = scmp.eq.s32.totalorder %s27, 0
      %p55 = por %p53, %p54
      %p56 = scmp.ne.s32.totalorder %s44, %s45
      %p57 = scmp.eq.s32.totalorder %s28, 3
      %p58 = por %p56, %p57
      %p60 = scmp.ne.s32.totalorder %s45, %s59
      %p61 = scmp.eq.s32.totalorder %s28, 0
      %p62 = por %p60, %p61
      %s64 = sadd.s32 %s63, 1
      %p67 = scmp.eq.s32.totalorder %s22, 3
      %p68 = scmp.ne.s32.totalorder %s63, %s65
      %p69 = scmp.eq.s32.totalorder %s22, 0
      %p70 = por %p68, %p69
      %p71 = scmp.ne.s32.totalorder %s63, %s65
      %p72 = scmp.eq.s32.totalorder %s27, 3
      %p73 = por %p71, %p72
      %p74 = scmp.ne.s32.totalorder %s65, %s66
      %p75 = scmp.eq.s32.totalorder %s27, 0
      %p76 = por %p74, %p75
      %p77 = scmp.ne.s32.totalorder %s65, %s66
      %p78 = scmp.eq.s32.totalorder %s28, 3
      %p79 = por %p77, %p78
      %p81 = scmp.ne.s32.totalorder %s66, %s80
      %p82 = scmp.eq.s32.totalorder %s28, 0
      %p83 = por %p81, %p82
      %s84 = ssub.s32 %s29, %s41
      %s85 = ssub.s32 %s30, %s37
      %s86 = sor.u32 %s84, %s85
      %p87 = scmp.eq.s32.totalorder %s86, 0
      %s89 = sadd.s32 %s88, 1
      %s90 = scalar_select %p87, %s88, %s89
      %p93 = pneg %p87
      %p94 = scmp.eq.s32.totalorder %s22, 3
      %p95 = por %p93, %p94
      %p96 = scmp.ne.s32.totalorder %s88, %s91
      %p97 = scmp.eq.s32.totalorder %s22, 0
      %p98 = por %p96, %p97
      %p99 = scmp.ne.s32.totalorder %s88, %s91
      %p100 = scmp.eq.s32.totalorder %s27, 3
      %p101 = por %p99, %p100
      %p102 = scmp.ne.s32.totalorder %s91, %s92
      %p103 = scmp.eq.s32.totalorder %s27, 0
      %p104 = por %p102, %p103
      %p105 = scmp.ne.s32.totalorder %s91, %s92
      %p106 = scmp.eq.s32.totalorder %s28, 3
      %p107 = por %p105, %p106
      %p109 = scmp.ne.s32.totalorder %s92, %s108
      %p110 = scmp.eq.s32.totalorder %s28, 0
      %p111 = por %p109, %p110
      %s112 = ssub.s32 %s29, %s41
      %s113 = ssub.s32 %s30, %s37
      %s114 = sor.u32 %s112, %s113
      %p115 = scmp.eq.s32.totalorder %s114, 0
      %s117 = sadd.s32 %s116, 1
      %s118 = scalar_select %p115, %s116, %s117
      %p121 = pneg %p115
      %p122 = scmp.eq.s32.totalorder %s22, 3
      %p123 = por %p121, %p122
      %p124 = scmp.ne.s32.totalorder %s116, %s119
      %p125 = scmp.eq.s32.totalorder %s22, 0
      %p126 = por %p124, %p125
      %p127 = scmp.ne.s32.totalorder %s116, %s119
      %p128 = scmp.eq.s32.totalorder %s27, 3
      %p129 = por %p127, %p128
      %p130 = scmp.ne.s32.totalorder %s119, %s120
      %p131 = scmp.eq.s32.totalorder %s27, 0
      %p132 = por %p130, %p131
      %p133 = scmp.ne.s32.totalorder %s119, %s120
      %p134 = scmp.eq.s32.totalorder %s28, 3
      %p135 = por %p133, %p134
      %p137 = scmp.ne.s32.totalorder %s120, %s136
      %p138 = scmp.eq.s32.totalorder %s28, 0
      %p139 = por %p137, %p138
      %s140 = ssub.s32 %s29, %s41
      %s141 = ssub.s32 %s30, %s37
      %s142 = sor.u32 %s140, %s141
      %p143 = scmp.eq.s32.totalorder %s142, 0
      %s145 = sadd.s32 %s144, 1
      %s146 = scalar_select %p143, %s144, %s145
      %p149 = pneg %p143
      %p150 = scmp.eq.s32.totalorder %s22, 3
      %p151 = por %p149, %p150
      %p152 = scmp.ne.s32.totalorder %s144, %s147
      %p153 = scmp.eq.s32.totalorder %s22, 0
      %p154 = por %p152, %p153
      %p155 = scmp.ne.s32.totalorder %s144, %s147
      %p156 = scmp.eq.s32.totalorder %s27, 3
      %p157 = por %p155, %p156
      %p158 = scmp.ne.s32.totalorder %s147, %s148
      %p159 = scmp.eq.s32.totalorder %s27, 0
      %p160 = por %p158, %p159
      %p161 = scmp.ne.s32.totalorder %s147, %s148
      %p162 = scmp.eq.s32.totalorder %s28, 3
      %p163 = por %p161, %p162
      %p165 = scmp.ne.s32.totalorder %s148, %s164
      %p166 = scmp.eq.s32.totalorder %s28, 0
      %p167 = por %p165, %p166
      %s168 = ssub.s32 %s29, %s41
      %s169 = ssub.s32 %s30, %s37
      %s170 = sor.u32 %s168, %s169
      %p171 = scmp.eq.s32.totalorder %s170, 0
      %s173 = sadd.s32 %s172, 1
      %s174 = scalar_select %p171, %s172, %s173
      %p177 = pneg %p171
      %p178 = scmp.eq.s32.totalorder %s22, 3
      %p179 = por %p177, %p178
      %p180 = scmp.ne.s32.totalorder %s172, %s175
      %p181 = scmp.eq.s32.totalorder %s22, 0
      %p182 = por %p180, %p181
      %p183 = scmp.ne.s32.totalorder %s172, %s175
      %p184 = scmp.eq.s32.totalorder %s27, 3
      %p185 = por %p183, %p184
      %p186 = scmp.ne.s32.totalorder %s175, %s176
      %p187 = scmp.eq.s32.totalorder %s27, 0
      %p188 = por %p186, %p187
      %p189 = scmp.ne.s32.totalorder %s175, %s176
      %p190 = scmp.eq.s32.totalorder %s28, 3
      %p191 = por %p189, %p190
      %p193 = scmp.ne.s32.totalorder %s176, %s192
      %p194 = scmp.eq.s32.totalorder %s28, 0
      %p195 = por %p193, %p194
      %p196 = scmp.le.s32.totalorder 1, %s22
      %p197 = scmp.lt.s32.totalorder %s22, 5
      %p198 = pnand %p196, %p197
      %p199 = pneg %p198
      // Predicated region
      $region9: #{tpu_custom_call.1} parent=5 // pred_check
        _
      $region10: #{tpu_custom_call.1} parent=5 // pred_check_branch
        %201 = sbr.rel (%p198) target = $region12
      $region11: #{tpu_custom_call.1} parent=5 // pred_region
        %s202 = ssub.s32 %s22, 1
        // Predicated region
        $region13: #{tpu_custom_call.1} parent=11 // pred_check
          %p203 = pneg %p55
        $region14: #{tpu_custom_call.1} parent=11 // pred_check_branch
          %205 = sbr.rel (%p203) target = $region16
        $region15: #{tpu_custom_call.1} parent=11 // pred_region
          %s207 = ssub.s32 16, 16
          %208 = vsyncadd [#allocation6], %s207
          %211 = dma.hbm_to_smem %s0, 16, [#allocation3], [#allocation6]
        $region16: #{tpu_custom_call.1} parent=11 // pred_fallthru
          _
        // Predicated region
        $region17: #{tpu_custom_call.1} parent=11 // pred_check
          %p212 = pneg %p76
        $region18: #{tpu_custom_call.1} parent=11 // pred_check_branch
          %214 = sbr.rel (%p212) target = $region20
        $region19: #{tpu_custom_call.1} parent=11 // pred_region
          %s216 = ssub.s32 32, 32
          %217 = vsyncadd [#allocation4], %s216
          %s219 = sshll.u32 [#allocation7], 4
          %s220 = int_to_ptr.vmem [resolvable:$true] %s219
          %222 = dma.hbm_to_vmem [thread:$0]  %s1, 32, %s220, [#allocation4]
        $region20: #{tpu_custom_call.1} parent=11 // pred_fallthru
          _
      $region12: #{tpu_custom_call.1} parent=5 // pred_fallthru
        _
      %p223 = scmp.lt.s32.totalorder %s22, 4
      // Predicated region
      $region21: #{tpu_custom_call.1} parent=5 // pred_check
        %p224 = pneg %p223
      $region22: #{tpu_custom_call.1} parent=5 // pred_check_branch
        %226 = sbr.rel (%p224) target = $region24
      $region23: #{tpu_custom_call.1} parent=5 // pred_region
        // Predicated region
        $region25: #{tpu_custom_call.1} parent=23 // pred_check
          %p227 = pneg %p98
        $region26: #{tpu_custom_call.1} parent=23 // pred_check_branch
          %229 = sbr.rel (%p227) target = $region28
        $region27: #{tpu_custom_call.1} parent=23 // pred_region
          %s230 = sand.u32 %s22, 1
          %s231 = scalar_lea.sflag [#allocation9], %s230
          %s232 = sand.u32 %s88, 1
          %s233 = smul.addr %s232, 8
          %s234 = scalar_lea.vmem [#allocation8], %s233
          %s236 = ssub.s32 128, 128
          %237 = vsyncadd %s231, %s236
          %s238 = smul.addr %s29, 2
          %s239 = sadd.s32 %s30, %s238
          %s240 = smul.addr %s239, 128
          %s241 = scalar_lea.hbm %s2, %s240
          %s243 = sshll.u32 %s234, 4
          %s244 = int_to_ptr.vmem [resolvable:$true] %s243
          %246 = dma.hbm_to_vmem [thread:$0]  %s241, 128, %s244, %s231
        $region28: #{tpu_custom_call.1} parent=23 // pred_fallthru
          _
        // Predicated region
        $region29: #{tpu_custom_call.1} parent=23 // pred_check
          %p247 = pneg %p126
        $region30: #{tpu_custom_call.1} parent=23 // pred_check_branch
          %249 = sbr.rel (%p247) target = $region32
        $region31: #{tpu_custom_call.1} parent=23 // pred_region
          %s250 = sand.u32 %s22, 1
          %s251 = scalar_lea.sflag [#allocation9], %s250
          %s252 = sand.u32 %s116, 1
          %s253 = smul.addr %s252, 4
          %s254 = scalar_lea.vmem [#allocation10], %s253
          %s256 = ssub.s32 64, 64
          %257 = vsyncadd %s251, %s256
          %s258 = smul.addr %s29, 2
          %s259 = sadd.s32 %s30, %s258
          %s260 = smul.addr %s259, 64
          %s261 = scalar_lea.hbm %s3, %s260
          %s263 = sshll.u32 %s254, 4
          %s264 = int_to_ptr.vmem [resolvable:$true] %s263
          %266 = dma.hbm_to_vmem [thread:$0]  %s261, 64, %s264, %s251
        $region32: #{tpu_custom_call.1} parent=23 // pred_fallthru
          _
        // Predicated region
        $region33: #{tpu_custom_call.1} parent=23 // pred_check
          %p267 = pneg %p154
        $region34: #{tpu_custom_call.1} parent=23 // pred_check_branch
          %269 = sbr.rel (%p267) target = $region36
        $region35: #{tpu_custom_call.1} parent=23 // pred_region
          %s270 = sand.u32 %s144, 1
          %s271 = scalar_lea.sflag [#allocation12], %s270
          %s272 = sand.u32 %s144, 1
          %s273 = smul.addr %s272, 4
          %s274 = scalar_lea.vmem [#allocation11], %s273
          %s276 = ssub.s32 64, 64
          %277 = vsyncadd %s271, %s276
          %s278 = smul.addr %s29, 2
          %s279 = sadd.s32 %s30, %s278
          %s280 = smul.addr %s279, 64
          %s281 = scalar_lea.hbm %s4, %s280
          %s283 = sshll.u32 %s274, 4
          %s284 = int_to_ptr.vmem [resolvable:$true] %s283
          %286 = dma.hbm_to_vmem [thread:$0]  %s281, 64, %s284, %s271
        $region36: #{tpu_custom_call.1} parent=23 // pred_fallthru
          _
      $region24: #{tpu_custom_call.1} parent=5 // pred_fallthru
        _
      %p287 = scmp.le.s32.totalorder 1, %s22
      %p288 = scmp.lt.s32.totalorder %s22, 5
      %p289 = pnand %p287, %p288
      %p290 = pneg %p289
      // Predicated region
      $region37: #{tpu_custom_call.1} parent=5 // pred_check
        _
      $region38: #{tpu_custom_call.1} parent=5 // pred_check_branch
        %292 = sbr.rel (%p289) target = $region40
      $region39: #{tpu_custom_call.1} parent=5 // pred_region
        %s293 = ssub.s32 %s22, 1
        // Predicated region
        $region41: #{tpu_custom_call.1} parent=39 // pred_check
          %p294 = pneg %p55
        $region42: #{tpu_custom_call.1} parent=39 // pred_check_branch
          %296 = sbr.rel (%p294) target = $region44
        $region43: #{tpu_custom_call.1} parent=39 // pred_region
          %297 = dma.done [#allocation6], 16
        $region44: #{tpu_custom_call.1} parent=39 // pred_fallthru
          _
        // Predicated region
        $region45: #{tpu_custom_call.1} parent=39 // pred_check
          %p298 = pneg %p76
        $region46: #{tpu_custom_call.1} parent=39 // pred_check_branch
          %300 = sbr.rel (%p298) target = $region48
        $region47: #{tpu_custom_call.1} parent=39 // pred_region
          %301 = dma.done [#allocation4], 32
        $region48: #{tpu_custom_call.1} parent=39 // pred_fallthru
          _
        %s302 = sand.u32 %s27, 1
        %s303 = scalar_lea.sflag [#allocation9], %s302
        %s304 = sand.u32 %s91, 1
        %s305 = smul.addr %s304, 8
        %s306 = scalar_lea.vmem [#allocation8], %s305
        // Predicated region
        $region49: #{tpu_custom_call.1} parent=39 // pred_check
          %p307 = pneg %p104
        $region50: #{tpu_custom_call.1} parent=39 // pred_check_branch
          %309 = sbr.rel (%p307) target = $region52
        $region51: #{tpu_custom_call.1} parent=39 // pred_region
          %310 = dma.done %s303, 128
        $region52: #{tpu_custom_call.1} parent=39 // pred_fallthru
          _
        %s311 = sand.u32 %s27, 1
        %s312 = scalar_lea.sflag [#allocation9], %s311
        %s313 = sand.u32 %s119, 1
        %s314 = smul.addr %s313, 4
        %s315 = scalar_lea.vmem [#allocation10], %s314
        // Predicated region
        $region53: #{tpu_custom_call.1} parent=39 // pred_check
          %p316 = pneg %p132
        $region54: #{tpu_custom_call.1} parent=39 // pred_check_branch
          %318 = sbr.rel (%p316) target = $region56
        $region55: #{tpu_custom_call.1} parent=39 // pred_region
          %319 = dma.done %s312, 64
        $region56: #{tpu_custom_call.1} parent=39 // pred_fallthru
          _
        %s320 = sand.u32 %s147, 1
        %s321 = scalar_lea.sflag [#allocation12], %s320
        %s322 = sand.u32 %s147, 1
        %s323 = smul.addr %s322, 4
        %s324 = scalar_lea.vmem [#allocation11], %s323
        // Predicated region
        $region57: #{tpu_custom_call.1} parent=39 // pred_check
          %p325 = pneg %p160
        $region58: #{tpu_custom_call.1} parent=39 // pred_check_branch
          %327 = sbr.rel (%p325) target = $region60
        $region59: #{tpu_custom_call.1} parent=39 // pred_region
          %328 = dma.done %s321, 64
        $region60: #{tpu_custom_call.1} parent=39 // pred_fallthru
          _
        %329 = sfence
        %p330 = pneg %p55
        %p331 = pneg %p52
        %p332 = pneg %p76
        %p333 = pneg %p73
        %s334 = sand.u32 %s27, 1
        %s335 = scalar_lea.sflag [#allocation9], %s334
        %s336 = sand.u32 %s91, 1
        %s337 = smul.addr %s336, 8
        %s338 = scalar_lea.vmem [#allocation8], %s337
        %p339 = pneg %p104
        %p340 = pneg %p101
        %s341 = sand.u32 %s27, 1
        %s342 = scalar_lea.sflag [#allocation9], %s341
        %s343 = sand.u32 %s119, 1
        %s344 = smul.addr %s343, 4
        %s345 = scalar_lea.vmem [#allocation10], %s344
        %p346 = pneg %p132
        %p347 = pneg %p129
        %s348 = sand.u32 %s147, 1
        %s349 = scalar_lea.sflag [#allocation12], %s348
        %s350 = sand.u32 %s147, 1
        %s351 = smul.addr %s350, 4
        %s352 = scalar_lea.vmem [#allocation11], %s351
        %p353 = pneg %p160
        %p354 = pneg %p157
        %p355 = pneg %p188
        %p356 = pneg %p185
        %s357 = sand.u32 %s175, 1
        %s358 = scalar_lea.sflag [#allocation5], %s357
        %s359 = sand.u32 %s175, 1
        %s360 = smul.addr %s359, 4
        %s361 = scalar_lea.vmem [#allocation13], %s360
        %s362 = sld [smem:[#allocation3]]
        %s363 = sld [smem:[#allocation3 + $0x1]]
        %s364 = sld [smem:[#allocation3 + $0x2]]
        %s365 = sld [smem:[#allocation3 + $0x3]]
        %s366 = sld [smem:[#allocation3 + $0x4]]
        %s367 = sld [smem:[#allocation3 + $0x5]]
        %s368 = sld [smem:[#allocation3 + $0x6]]
        %s369 = sld [smem:[#allocation3 + $0x7]]
        %s370 = sld [smem:[#allocation3 + $0x8]]
        %s371 = sld [smem:[#allocation3 + $0x9]]
        %s372 = sld [smem:[#allocation3 + $0xa]]
        %s373 = sld [smem:[#allocation3 + $0xb]]
        %s374 = sld [smem:[#allocation3 + $0xc]]
        %s375 = sld [smem:[#allocation3 + $0xd]]
        %s376 = sld [smem:[#allocation3 + $0xe]]
        %s377 = sld [smem:[#allocation3 + $0xf]]
        %s378 = sld [smem:[#allocation3 + $0x10]]
        %s379 = sld [smem:[#allocation3 + $0x11]]
        %v380 = vld [vmem:[%s315] sm:$0xf]
        %vm381 = vcmask 1043456
        %v382 = vsel %vm381, %v380, -inf
        %v383 = vrot.slane %v382, 4
        %v384 = vmax.f32 %v382, %v383
        %v385 = vrot.slane %v384, 2
        %v386 = vmax.f32 %v384, %v385
        %v387 = vrot.slane %v386, 1
        %v388 = vmax.f32 %v386, %v387
        %389 = vst [vmem:[#allocation2 + $0x4] sm:$0x1] %v388
        %v390 = vsel %vm381, %v380, 0.0
        %v391 = vrot.slane %v390, 4
        %v392 = vadd.f32 %v390, %v391
        %v393 = vrot.slane %v392, 2
        %v394 = vadd.f32 %v392, %v393
        %v395 = vrot.slane %v394, 1
        %v396 = vadd.f32 %v394, %v395
        %v397 = vmul.f32 %v396, 0.25
        %398 = vst [vmem:[#allocation2 + $0x5] sm:$0x1] %v397
        %v399 = vld [vmem:[%s324] sm:$0xf]
        %v400 = vsel %vm381, %v399, -inf
        %v401 = vrot.slane %v400, 4
        %v402 = vmax.f32 %v400, %v401
        %v403 = vrot.slane %v402, 2
        %v404 = vmax.f32 %v402, %v403
        %v405 = vrot.slane %v404, 1
        %v406 = vmax.f32 %v404, %v405
        %407 = vst [vmem:[#allocation2 + $0x6] sm:$0x1] %v406
        %v408 = vsel %vm381, %v399, 0.0
        %v409 = vrot.slane %v408, 4
        %v410 = vadd.f32 %v408, %v409
        %v411 = vrot.slane %v410, 2
        %v412 = vadd.f32 %v410, %v411
        %v413 = vrot.slane %v412, 1
        %v414 = vadd.f32 %v412, %v413
        %v415 = vmul.f32 %v414, 0.25
        %416 = vst [vmem:[#allocation2 + $0x7] sm:$0x1] %v415
        %417 = vst [vmem:[#allocation2] sm:$0xf] 0.0
        %418 = vst [vmem:[#allocation2 + $0x8] sm:$0xf] 0.0
        %v419 = vld [vmem:[%s306] sm:$0xff]
        %421 = vrot.lane.b32.xlu0 %v419, 112
        %v422 = vpop.permute.xlu0 %421
        %vm424 = vcmask 1044352
        %425 = vst.msk [vmem:[#allocation2] sm:$0xf] %vm424, %v422
        %v426 = vcombine.high %v419, %v419
        %vm428 = vcmask 125952
        %429 = vst.msk [vmem:[#allocation2 + $0x8] sm:$0xf] %vm428, %v426
        %v430 = vld [vmem:[#allocation7] sm:$0x1]
        %v431 = vld [vmem:[#allocation7 + $0x1] sm:$0x1]
        %v432 = vld [vmem:[#allocation2] sm:$0xff]
        %v433 = vstv %s362
        %v434 = vmul.f32 %v433, %v432
        %v435 = vstv %s371
        %v436 = vmul.f32 %v435, %v432
        %v438 = vrot.slane %v436, 5
        %v439 = vrot.slane %v438, 4
        %v441 = vadd.f32 %v434, %v439
        %443 = vrot.lane.b32.xlu0 %v430, 111
        %v444 = vpop.permute.xlu0 %443
        %v445 = vrot.slane %v444, 4
        %vm446 = vcmask 908288
        %v447 = vsel %vm446, %v445, %v444
        %v449 = vmul.f32 %v441, %v447
        %v450 = vrot.slane %v430, 6
        %451 = vrot.lane.b32.xlu0 %v450, 111
        %v452 = vpop.permute.xlu0 %451
        %v453 = vrot.slane %v452, 4
        %v454 = vsel %vm446, %v453, %v452
        %v456 = vmul.f32 %v441, %v454
        %v457 = vadd.f32 %v449, 0.0
        %v458 = vadd.f32 %v456, 0.0
        %v459 = vstv %s363
        %v460 = vmul.f32 %v459, %v432
        %v461 = vstv %s372
        %v462 = vmul.f32 %v461, %v432
        %v464 = vrot.slane %v462, 5
        %v465 = vrot.slane %v464, 4
        %v467 = vadd.f32 %v460, %v465
        %469 = vrot.lane.b32.xlu0 %v467, 127
        %v470 = vpop.permute.xlu0 %469
        %v471 = vrot.slane %v470, 4
        %vm472 = vcmask 1039360
        %v473 = vsel %vm472, %v470, %v471
        %v475 = vadd.f32 %v457, %v473
        %v476 = vadd.f32 %v458, %v473
        %v477 = vstv %s364
        %v478 = vmul.f32 %v477, %v432
        %v479 = vstv %s373
        %v480 = vmul.f32 %v479, %v432
        %v482 = vrot.slane %v480, 5
        %v483 = vrot.slane %v482, 4
        %v485 = vadd.f32 %v478, %v483
        %487 = vrot.lane.b32.xlu0 %v431, 113
        %v488 = vpop.permute.xlu0 %487
        %v489 = vrot.slane %v488, 4
        %vm490 = vcmask 924672
        %v491 = vsel %vm490, %v489, %v488
        %v493 = vmul.f32 %v485, %v491
        %v494 = vrot.slane %v431, 6
        %495 = vrot.lane.b32.xlu0 %v494, 113
        %v496 = vpop.permute.xlu0 %495
        %v497 = vrot.slane %v496, 4
        %v498 = vsel %vm490, %v497, %v496
        %v500 = vmul.f32 %v485, %v498
        %502 = vrot.lane.b32.xlu0 %v493, 126
        %v503 = vpop.permute.xlu0 %502
        %v504 = vrot.slane %v503, 4
        %vm505 = vcmask 1031168
        %v506 = vsel %vm505, %v503, %v504
        %v508 = vadd.f32 %v475, %v506
        %510 = vrot.lane.b32.xlu0 %v500, 126
        %v511 = vpop.permute.xlu0 %510
        %v512 = vrot.slane %v511, 4
        %v513 = vsel %vm505, %v511, %v512
        %v515 = vadd.f32 %v476, %v513
        %v516 = vstv %s365
        %v517 = vmul.f32 %v516, %v432
        %v518 = vstv %s374
        %v519 = vmul.f32 %v518, %v432
        %v521 = vrot.slane %v519, 5
        %v522 = vrot.slane %v521, 4
        %v524 = vadd.f32 %v517, %v522
        %525 = vrot.lane.b32.xlu0 %v430, 127
        %v526 = vpop.permute.xlu0 %525
        %v527 = vrot.slane %v526, 4
        %v528 = vsel %vm472, %v527, %v526
        %v530 = vmul.f32 %v524, %v528
        %531 = vrot.lane.b32.xlu0 %v450, 127
        %v532 = vpop.permute.xlu0 %531
        %v533 = vrot.slane %v532, 4
        %v534 = vsel %vm472, %v533, %v532
        %v536 = vmul.f32 %v524, %v534
        %538 = vrot.lane.b32.xlu0 %v530, 112
        %v539 = vpop.permute.xlu0 %538
        %v540 = vrot.slane %v539, 4
        %vm541 = vcmask 916480
        %v542 = vsel %vm541, %v539, %v540
        %v544 = vadd.f32 %v508, %v542
        %546 = vrot.lane.b32.xlu0 %v536, 112
        %v547 = vpop.permute.xlu0 %546
        %v548 = vrot.slane %v547, 4
        %v549 = vsel %vm541, %v547, %v548
        %v551 = vadd.f32 %v515, %v549
        %v552 = vld [vmem:[#allocation2 + $0x4] sm:$0xf]
        %v553 = vstv %s366
        %v554 = vmul.f32 %v553, %v552
        %v555 = vstv %s375
        %v556 = vmul.f32 %v555, %v552
        %v558 = vrot.slane %v556, 5
        %v559 = vrot.slane %v558, 4
        %v561 = vadd.f32 %v554, %v559
        %563 = vrot.lane.b32.xlu0 %v561, 111
        %v564 = vpop.permute.xlu0 %563
        %v565 = vrot.slane %v564, 4
        %v566 = vsel %vm446, %v565, %v564
        %v568 = vadd.f32 %v544, %v566
        %v569 = vadd.f32 %v551, %v566
        %v570 = vld [vmem:[#allocation2 + $0x4] sm:$0xff]
        %v571 = vstv %s367
        %v572 = vmul.f32 %v571, %v570
        %v573 = vstv %s376
        %v574 = vmul.f32 %v573, %v570
        %v576 = vrot.slane %v574, 5
        %v577 = vrot.slane %v576, 4
        %v579 = vadd.f32 %v572, %v577
        %580 = vrot.lane.b32.xlu0 %v431, 1
        %v581 = vpop.permute.xlu0 %580
        %v582 = vrot.slane %v581, 4
        %vm583 = vcmask 7168
        %v584 = vsel %vm583, %v582, %v581
        %v586 = vmul.f32 %v579, %v584
        %587 = vrot.lane.b32.xlu0 %v494, 1
        %v588 = vpop.permute.xlu0 %587
        %v589 = vrot.slane %v588, 4
        %v590 = vsel %vm583, %v589, %v588
        %v592 = vmul.f32 %v579, %v590
        %594 = vrot.lane.b32.xlu0 %v586, 110
        %v595 = vpop.permute.xlu0 %594
        %v596 = vrot.slane %v595, 4
        %vm597 = vcmask 900096
        %v598 = vsel %vm597, %v596, %v595
        %v600 = vadd.f32 %v568, %v598
        %602 = vrot.lane.b32.xlu0 %v592, 110
        %v603 = vpop.permute.xlu0 %602
        %v604 = vrot.slane %v603, 4
        %v605 = vsel %vm597, %v604, %v603
        %v607 = vadd.f32 %v569, %v605
        %v608 = vstv %s368
        %v609 = vmul.f32 %v608, %v570
        %v610 = vstv %s377
        %v611 = vmul.f32 %v610, %v570
        %v613 = vrot.slane %v611, 5
        %v614 = vrot.slane %v613, 4
        %v616 = vadd.f32 %v609, %v614
        %617 = vrot.lane.b32.xlu0 %v430, 15
        %v618 = vpop.permute.xlu0 %617
        %v619 = vrot.slane %v618, 4
        %vm620 = vcmask 121856
        %v621 = vsel %vm620, %v619, %v618
        %v623 = vmul.f32 %v616, %v621
        %624 = vrot.lane.b32.xlu0 %v450, 15
        %v625 = vpop.permute.xlu0 %624
        %v626 = vrot.slane %v625, 4
        %v627 = vsel %vm620, %v626, %v625
        %v629 = vmul.f32 %v616, %v627
        %631 = vrot.lane.b32.xlu0 %v623, 96
        %v632 = vpop.permute.xlu0 %631
        %v633 = vrot.slane %v632, 4
        %vm634 = vcmask 785408
        %v635 = vsel %vm634, %v633, %v632
        %v637 = vadd.f32 %v600, %v635
        %639 = vrot.lane.b32.xlu0 %v629, 96
        %v640 = vpop.permute.xlu0 %639
        %v641 = vrot.slane %v640, 4
        %v642 = vsel %vm634, %v641, %v640
        %v644 = vadd.f32 %v607, %v642
        %v645 = vstv %s369
        %v646 = vmul.f32 %v645, %v570
        %v647 = vstv %s378
        %v648 = vmul.f32 %v647, %v570
        %v650 = vrot.slane %v648, 5
        %v651 = vrot.slane %v650, 4
        %v653 = vadd.f32 %v646, %v651
        %655 = vrot.lane.b32.xlu0 %v653, 95
        %v656 = vpop.permute.xlu0 %655
        %v657 = vrot.slane %v656, 4
        %vm658 = vcmask 777216
        %v659 = vsel %vm658, %v657, %v656
        %v661 = vadd.f32 %v637, %v659
        %v662 = vadd.f32 %v644, %v659
        %v663 = vstv %s370
        %v664 = vmul.f32 %v663, %v570
        %v665 = vstv %s379
        %v666 = vmul.f32 %v665, %v570
        %v668 = vrot.slane %v666, 5
        %v669 = vrot.slane %v668, 4
        %v671 = vadd.f32 %v664, %v669
        %672 = vrot.lane.b32.xlu0 %v431, 17
        %v673 = vpop.permute.xlu0 %672
        %v674 = vrot.slane %v673, 4
        %vm675 = vcmask 138240
        %v676 = vsel %vm675, %v674, %v673
        %v678 = vmul.f32 %v671, %v676
        %679 = vrot.lane.b32.xlu0 %v494, 17
        %v680 = vpop.permute.xlu0 %679
        %v681 = vrot.slane %v680, 4
        %v682 = vsel %vm675, %v681, %v680
        %v684 = vmul.f32 %v671, %v682
        %686 = vrot.lane.b32.xlu0 %v678, 94
        %v687 = vpop.permute.xlu0 %686
        %v688 = vrot.slane %v687, 4
        %vm689 = vcmask 769024
        %v690 = vsel %vm689, %v688, %v687
        %v692 = vadd.f32 %v661, %v690
        %694 = vrot.lane.b32.xlu0 %v684, 94
        %v695 = vpop.permute.xlu0 %694
        %v696 = vrot.slane %v695, 4
        %v697 = vsel %vm689, %v696, %v695
        %v699 = vadd.f32 %v662, %v697
        %vm700 = vcmp.gt.f32.partialorder %v692, 0.0
        %v701 = vmul.f32 %v692, 0.01
        %v702 = vsel %vm700, %v692, %v701
        %vm703 = vcmp.gt.f32.partialorder %v699, 0.0
        %v704 = vmul.f32 %v699, 0.01
        %v705 = vsel %vm703, %v699, %v704
        %v706 = vld [vmem:[%s315] sm:$0xf]
        %v708 = vlaneseq
        %v709 = vshrl.u32 %v708, 7
        %v710 = vsub.s32 0, %v709
        %v711 = vrot.slane %v702, %v710
        %v712 = vlaneseq
        %v713 = vshrl.u32 %v712, 7
        %v714 = vsub.s32 4, %v713
        %v715 = vrot.slane %v702, %v714
        %v718 = vlaneseq
        %v719 = vshrl.u32 %v718, 7
        %v720 = vsub.s32 0, %v719
        %v721 = vrot.slane %v711, %v720
        %v722 = vlaneseq
        %v723 = vshrl.u32 %v722, 7
        %v724 = vsub.s32 0, %v723
        %v725 = vrot.slane %v715, %v724
        %727 = vrot.lane.b32.xlu0 %v706, 111
        %v728 = vpop.permute.xlu0 %727
        %v730 = vmul.f32 %v721, %v728
        %v731 = vmul.f32 %v725, %v728
        %v732 = vld [vmem:[%s324] sm:$0xf]
        %v734 = vlaneseq
        %v735 = vshrl.u32 %v734, 7
        %v736 = vsub.s32 2, %v735
        %v737 = vrot.slane %v705, %v736
        %v738 = vlaneseq
        %v739 = vshrl.u32 %v738, 7
        %v740 = vsub.s32 6, %v739
        %v741 = vrot.slane %v705, %v740
        %v744 = vlaneseq
        %v745 = vshrl.u32 %v744, 7
        %v746 = vsub.s32 2, %v745
        %v747 = vrot.slane %v737, %v746
        %v748 = vlaneseq
        %v749 = vshrl.u32 %v748, 7
        %v750 = vsub.s32 2, %v749
        %v751 = vrot.slane %v741, %v750
        %753 = vrot.lane.b32.xlu0 %v732, 111
        %v754 = vpop.permute.xlu0 %753
        %v756 = vmul.f32 %v747, %v754
        %v757 = vmul.f32 %v751, %v754
        %v758 = vadd.f32 %v730, %v756
        %v759 = vadd.f32 %v731, %v757
        %762 = vrot.lane.b32.xlu0 %v758, 17
        %v763 = vpop.permute.xlu0 %762
        %764 = vrot.lane.b32.xlu0 %v759, 17
        %v765 = vpop.permute.xlu0 %764
        %v766 = vsel %vm675, %v763, %v765
        %768 = vst [vmem:[%s361] sm:$0xf] %v766
        %s769 = sand.u32 %s175, 1
        %s770 = scalar_lea.sflag [#allocation5], %s769
        %s771 = sand.u32 %s175, 1
        %s772 = smul.addr %s771, 4
        %s773 = scalar_lea.vmem [#allocation13], %s772
        // Predicated region
        $region61: #{tpu_custom_call.1} parent=39 // pred_check
          %p774 = pneg %p185
        $region62: #{tpu_custom_call.1} parent=39 // pred_check_branch
          %776 = sbr.rel (%p774) target = $region64
        $region63: #{tpu_custom_call.1} parent=39 // pred_region
          %s778 = ssub.s32 64, 64
          %779 = vsyncadd %s770, %s778
          %s780 = smul.addr %s31, 2
          %s781 = sadd.s32 %s32, %s780
          %s782 = smul.addr %s781, 64
          %s783 = scalar_lea.hbm %s5, %s782
          %s785 = sshll.u32 %s773, 4
          %s786 = int_to_ptr.vmem [resolvable:$true] %s785
          %788 = dma.vmem_to_hbm [thread:$0]  %s786, 64, %s783, %s770
        $region64: #{tpu_custom_call.1} parent=39 // pred_fallthru
          _
      $region40: #{tpu_custom_call.1} parent=5 // pred_fallthru
        _
      %p789 = scmp.le.s32.totalorder 2, %s22
      // Predicated region
      $region65: #{tpu_custom_call.1} parent=5 // pred_check
        %p790 = pneg %p789
      $region66: #{tpu_custom_call.1} parent=5 // pred_check_branch
        %792 = sbr.rel (%p790) target = $region68
      $region67: #{tpu_custom_call.1} parent=5 // pred_region
        %s793 = ssub.s32 %s22, 2
        // Predicated region
        $region69: #{tpu_custom_call.1} parent=67 // pred_check
          %p794 = pneg %p191
        $region70: #{tpu_custom_call.1} parent=67 // pred_check_branch
          %796 = sbr.rel (%p794) target = $region72
        $region71: #{tpu_custom_call.1} parent=67 // pred_region
          %s797 = sand.u32 %s176, 1
          %s798 = scalar_lea.sflag [#allocation5], %s797
          %s799 = sand.u32 %s176, 1
          %s800 = smul.addr %s799, 4
          %s801 = scalar_lea.vmem [#allocation13], %s800
          %802 = dma.done %s798, 64
        $region72: #{tpu_custom_call.1} parent=67 // pred_fallthru
          _
      $region68: #{tpu_custom_call.1} parent=5 // pred_fallthru
        _
    $region6: #{tpu_custom_call.1} parent=1 // loop_footer
      %s26 = sadd.s32 1, %s22
    $region7: #{tpu_custom_call.1} parent=1 // loop_footer_branch
      %21 = sbr.rel target = $region3
    $region8: #{tpu_custom_call.1} parent=1 // loop_exit
      _
    %803 = vsyncpa [#allocation4], 1
    %s804 = scalar_lea.sflag [#allocation4], 1
    %805 = vsyncpa %s804, 1
    %806 = vsyncpa [#allocation9], 1
    %s807 = scalar_lea.sflag [#allocation9], 1
    %808 = vsyncpa %s807, 1
    %809 = vsyncpa [#allocation12], 1
    %s810 = scalar_lea.sflag [#allocation12], 1
    %811 = vsyncpa %s810, 1
    %812 = vsyncpa [#allocation5], 1
    %s813 = scalar_lea.sflag [#allocation5], 1
    %814 = vsyncpa %s813, 1
    %815 = vsyncpa [#allocation6], 1
    %s816 = scalar_lea.sflag [#allocation6], 1
    %817 = vsyncpa %s816, 1

</llo_original>
